<compile_context>
chip_gen: v5e
topology: v5e:2x2
jax: 0.10.0
libtpu: 0.0.40
codegen_flags: <defaults>
</compile_context>

<pallas_src>
import jax
import jax.numpy as jnp
from jax.experimental import pallas as pl
from jax.experimental.pallas import tpu as pltpu


def _round_up(x, m):
    return (x + m - 1) // m * m


def _vmem_capacity_bytes(default_bytes=64 * 1024 * 1024):
    """Generation-aware VMEM capacity (v7x: 64 MiB/TC, v5e/v6e: 128 MiB)."""
    try:
        cap = getattr(pltpu.get_tpu_info(), "vmem_capacity_bytes", None)
        if cap:
            return int(cap)
    except Exception:
        pass
    return default_bytes


def _pick_time_chunk(T, Hp):
    """Steps per grid iteration.  Bigger chunks amortize per-step pipeline
    overhead; cap the chunk so the (Tc, tm, Hp) output slab stays small for
    wide hidden dims.  Only divisors of T are used (no padded time steps)."""
    max_chunk = 8 if Hp <= 1024 else (4 if Hp <= 4096 else 2)
    max_chunk = min(max_chunk, max(T, 1))
    for d in range(max_chunk, 0, -1):
        if T % d == 0:
            return d
    return 1


def rnn_kernel(x_ref, wx_ref, bx_ref, wh_ref, y_ref, xw_ref, state_ref):
    # x_ref:     (tm, I)          row tile of the flattened (T*B, I) input
    # wx_ref:    (I, Hp)          Wx^T, zero-padded to Hp lanes (single-buffered)
    # bx_ref:    (1, Hp)          bias, zero-padded            (single-buffered)
    # wh_ref:    (Hp, Hp)         Wh^T, zero-padded            (single-buffered)
    # y_ref:     (Tc, tm, Hp)     output slab for this time chunk (streamed)
    # xw_ref:    (tm, Hp) f32     scratch: x @ Wx^T + b for this row tile
    # state_ref: (tm, Hp) dtype   scratch: carried recurrent state (I/O dtype)
    tc = pl.program_id(1)
    n_chunk_steps = y_ref.shape[0]

    def recur_step(s):
        # state <- tanh(xw + state @ Wh^T); f32 accumulate, single cast reused
        # for both the carried state and the streamed output row.
        hh = jnp.dot(state_ref[...].astype(wh_ref.dtype), wh_ref[...],
                     preferred_element_type=jnp.float32)
        st = jnp.tanh(xw_ref[...] + hh).astype(state_ref.dtype)
        state_ref[...] = st
        y_ref[s] = st.astype(y_ref.dtype)

    # First step of the very first chunk: compute xw once, s_0 = tanh(xw).
    @pl.when(tc == 0)
    def _():
        xw = jnp.dot(x_ref[...], wx_ref[...],
                     preferred_element_type=jnp.float32)
        xw = xw + bx_ref[...].astype(jnp.float32)
        xw_ref[...] = xw
        st0 = jnp.tanh(xw).astype(state_ref.dtype)
        state_ref[...] = st0
        y_ref[0] = st0.astype(y_ref.dtype)

    @pl.when(tc > 0)
    def _():
        recur_step(0)

    # Remaining (statically unrolled) steps of this time chunk.
    for s in range(1, n_chunk_steps):
        recur_step(s)


def rnn_layer_forward(x, w_x, b_x, w_h, *, max_rows_per_tile=1024):
    """x: (T, B, I); w_x: (H, I) torch layout; b_x: (H,); w_h: (H, H) torch layout.

    Returns (y, state) with y: (T, T, B, H) (the stacked per-step list) and
    state: (T, B, H), matching RNNLayer(x, state=None)."""
    T, B, I = x.shape
    H = w_x.shape[0]
    M = T * B
    dtype = x.dtype
    itemsize = jnp.dtype(dtype).itemsize

    # Lane-dense hidden dim; dtype-aware sublane granularity (8 f32 / 16 bf16).
    Hp = _round_up(H, 128)
    sublane = max(8, 32 // itemsize)

    # Time chunking (Tc divides T -> no padded steps).
    Tc = _pick_time_chunk(T, Hp)
    Tp = _round_up(T, Tc)  # == T

    # ---- VMEM-budgeted, megacore-aware row-tile sizing -----------------------
    vmem_cap = _vmem_capacity_bytes()
    vmem_limit = int(min(int(vmem_cap * 0.85), 112 * 1024 * 1024))
    budget = int(vmem_limit * 0.9)
    weight_bytes = (I * Hp + Hp + Hp * Hp) * itemsize            # single-buffered
    per_row_bytes = (2 * I * itemsize                            # x tile (2 bufs)
                     + Hp * 4                                    # xw scratch (f32)
                     + Hp * itemsize                             # state scratch
                     + 2 * Tc * Hp * itemsize)                   # y slab (2 bufs)
    tm_fit = max(sublane, (budget - weight_bytes) // per_row_bytes)
    tm_cap = max(sublane, (min(max_rows_per_tile, tm_fit) // sublane) * sublane)
    # >= 2 row tiles whenever M allows it, so both v7x TensorCores get work.
    min_tiles = 2 if M > sublane else 1
    n_tiles = max(min_tiles, -(-M // tm_cap))
    tm = _round_up(-(-M // n_tiles), sublane)
    Mp = _round_up(M, tm)

    # Zero-pad weights/bias to Hp (padded lanes stay exactly zero through the
    # recurrence) and flatten/pad x rows (rows are independent; padding sliced).
    wx_p = jnp.zeros((I, Hp), dtype).at[:, :H].set(w_x.T.astype(dtype))
    bx_p = jnp.zeros((1, Hp), dtype).at[:, :H].set(b_x.reshape(1, H).astype(dtype))
    wh_p = jnp.zeros((Hp, Hp), dtype).at[:H, :H].set(w_h.T.astype(dtype))
    x_flat = x.reshape(M, I)
    x2 = x_flat if Mp == M else jnp.zeros((Mp, I), dtype).at[:M].set(x_flat)

    grid = (Mp // tm, Tp // Tc)

    y = pl.pallas_call(
        rnn_kernel,
        out_shape=jax.ShapeDtypeStruct((Tp, Mp, Hp), dtype),
        grid_spec=pltpu.PrefetchScalarGridSpec(
            num_scalar_prefetch=0,
            grid=grid,
            in_specs=[
                # x row tile: depends on i only -> resident across the time axis.
                pl.BlockSpec((tm, I), lambda i, t: (i, 0)),
                # Constant weights/bias: VMEM-resident, single-buffered.
                pl.BlockSpec((I, Hp), lambda i, t: (0, 0),
                             pipeline_mode=pl.Buffered(1)),
                pl.BlockSpec((1, Hp), lambda i, t: (0, 0),
                             pipeline_mode=pl.Buffered(1)),
                pl.BlockSpec((Hp, Hp), lambda i, t: (0, 0),
                             pipeline_mode=pl.Buffered(1)),
            ],
            # One (Tc, tm, Hp) slab per grid step, streamed/double-buffered out.
            out_specs=pl.BlockSpec((Tc, tm, Hp), lambda i, t: (t, i, 0)),
            scratch_shapes=[
                pltpu.VMEM((tm, Hp), jnp.float32),   # xw (f32, per row tile)
                pltpu.VMEM((tm, Hp), dtype),         # carried state (I/O dtype)
            ],
        ),
        compiler_params=pltpu.CompilerParams(
            dimension_semantics=("parallel", "arbitrary"),
            vmem_limit_bytes=vmem_limit,
        ),
    )(x2, wx_p, bx_p, wh_p)

    if (Tp, Mp, Hp) != (T, M, H):
        y = y[:T, :M, :H]
    y = y.reshape(T, T, B, H)
    state = y[-1]
    return y, state


def rnn_layer_ref(x, w_x, b_x, w_h):
    """Pure-JAX reference reproducing the PyTorch module exactly (state=None)."""
    T = x.shape[0]
    xw = jnp.einsum("tbi,hi->tbh", x, w_x) + b_x
    state = jnp.tanh(xw)
    ys = [state]
    for _ in range(1, T):
        state = jnp.tanh(xw + jnp.einsum("tbh,gh->tbg", state, w_h))
        ys.append(state)
    return jnp.stack(ys), state


def _run_case(key, T, B, I, H):
    kx, kwx, kbx, kwh = jax.random.split(key, 4)
    x = jax.random.normal(kx, (T, B, I), dtype=jnp.float32)
    bnd_x = 1.0 / (I ** 0.5)
    bnd_h = 1.0 / (H ** 0.5)
    w_x = jax.random.uniform(kwx, (H, I), jnp.float32, -bnd_x, bnd_x)   # torch (out, in)
    b_x = jax.random.uniform(kbx, (H,), jnp.float32, -bnd_x, bnd_x)
    w_h = jax.random.uniform(kwh, (H, H), jnp.float32, -bnd_h, bnd_h)   # no bias

    y, state = rnn_layer_forward(x, w_x, b_x, w_h)
    jax.block_until_ready((y, state))

    y_ref, state_ref = rnn_layer_ref(x, w_x, b_x, w_h)
    assert y.shape == (T, T, B, H) and state.shape == (T, B, H)
    assert jnp.allclose(y, y_ref, rtol=1e-4, atol=1e-4)
    assert jnp.allclose(state, state_ref, rtol=1e-4, atol=1e-4)


if __name__ == "__main__":
    key = jax.random.PRNGKey(0)
    k0, k1 = jax.random.split(key)

    # Primary small case matching the module's implied shapes.
    _run_case(k0, T=8, B=2, I=16, H=32)
    # Secondary case exercising row padding / non-divisor shapes.
    _run_case(k1, T=6, B=3, I=24, H=40)

    print("KERNEL_OK")
</pallas_src>

<mosaic_0001>
module attributes {stable_mosaic.version = 11 : i64} {
  func.func @rnn_kernel(%arg0: i32, %arg1: i32, %arg2: memref<8x16xf32, #tpu.memory_space<vmem>>, %arg3: memref<16x128xf32, #tpu.memory_space<vmem>>, %arg4: memref<1x128xf32, #tpu.memory_space<vmem>>, %arg5: memref<128x128xf32, #tpu.memory_space<vmem>>, %arg6: memref<8x8x128xf32, #tpu.memory_space<vmem>>, %arg7: memref<8x128xf32, #tpu.memory_space<vmem>>, %arg8: memref<8x128xf32, #tpu.memory_space<vmem>>) attributes {dimension_semantics = [#tpu.dimension_semantics<parallel>, #tpu.dimension_semantics<arbitrary>], iteration_bounds = array<i64: 2, 1>, scalar_prefetch = 0 : i64, scratch_operands = 2 : i64, tpu.core_type = #tpu.core_type<tc>, window_params = [{transform_indices = @transform_0, window_bounds = array<i64: 8, 16>}, {pipeline_mode = #tpu.pipeline_mode<synchronous>, transform_indices = @transform_1, window_bounds = array<i64: 16, 128>}, {pipeline_mode = #tpu.pipeline_mode<synchronous>, transform_indices = @transform_2, window_bounds = array<i64: 1, 128>}, {pipeline_mode = #tpu.pipeline_mode<synchronous>, transform_indices = @transform_3, window_bounds = array<i64: 128, 128>}, {transform_indices = @transform_4, window_bounds = array<i64: 8, 8, 128>}]} {
    %c0_i32 = arith.constant 0 : i32
    %0 = arith.cmpi eq, %arg1, %c0_i32 : i32
    %1 = arith.extui %0 : i1 to i32
    %c0_i32_0 = arith.constant 0 : i32
    %2 = arith.cmpi ne, %1, %c0_i32_0 : i32
    scf.if %2 {
      %c0_78 = arith.constant 0 : index
      %c0_79 = arith.constant 0 : index
      %76 = vector.load %arg2[%c0_78, %c0_79] : memref<8x16xf32, #tpu.memory_space<vmem>>, vector<8x16xf32>
      %c0_80 = arith.constant 0 : index
      %c0_81 = arith.constant 0 : index
      %77 = vector.load %arg3[%c0_80, %c0_81] : memref<16x128xf32, #tpu.memory_space<vmem>>, vector<16x128xf32>
      %cst_82 = arith.constant dense<0.000000e+00> : vector<8x128xf32>
      %78 = tpu.matmul %76, %77, %cst_82 {dimension_numbers = #tpu.dot_dimension_numbers<[1], [0], [0], [1], [0, 0, 1, 1], [], []>} : vector<8x16xf32>, vector<16x128xf32>, vector<8x128xf32> -> vector<8x128xf32>
      %c0_83 = arith.constant 0 : index
      %c0_84 = arith.constant 0 : index
      %79 = vector.load %arg4[%c0_83, %c0_84] : memref<1x128xf32, #tpu.memory_space<vmem>>, vector<1x128xf32>
      %80 = vector.broadcast %79 : vector<1x128xf32> to vector<8x128xf32>
      %81 = arith.addf %78, %80 : vector<8x128xf32>
      %c0_85 = arith.constant 0 : index
      %c0_86 = arith.constant 0 : index
      %82 = vector.load %arg7[%c0_85, %c0_86] : memref<8x128xf32, #tpu.memory_space<vmem>>, vector<8x128xf32>
      tpu.vector_store %arg7[%c0_85, %c0_86], %81 {strides = array<i32>} : memref<8x128xf32, #tpu.memory_space<vmem>>, vector<8x128xf32>,
      %83 = math.tanh %81 : vector<8x128xf32>
      %c0_87 = arith.constant 0 : index
      %c0_88 = arith.constant 0 : index
      %84 = vector.load %arg8[%c0_87, %c0_88] : memref<8x128xf32, #tpu.memory_space<vmem>>, vector<8x128xf32>
      tpu.vector_store %arg8[%c0_87, %c0_88], %83 {strides = array<i32>} : memref<8x128xf32, #tpu.memory_space<vmem>>, vector<8x128xf32>,
      %c0_89 = arith.constant 0 : index
      %c0_90 = arith.constant 0 : index
      %c0_91 = arith.constant 0 : index
      %85 = vector.load %arg6[%c0_89, %c0_90, %c0_91] : memref<8x8x128xf32, #tpu.memory_space<vmem>>, vector<1x8x128xf32>
      %86 = vector.shape_cast %85 : vector<1x8x128xf32> to vector<8x128xf32>
      %87 = vector.shape_cast %83 : vector<8x128xf32> to vector<1x8x128xf32>
      tpu.vector_store %arg6[%c0_89, %c0_90, %c0_91], %87 {strides = array<i32>} : memref<8x8x128xf32, #tpu.memory_space<vmem>>, vector<1x8x128xf32>,
    } else {
    }
    %c0_i32_1 = arith.constant 0 : i32
    %3 = arith.cmpi sgt, %arg1, %c0_i32_1 : i32
    %4 = arith.extui %3 : i1 to i32
    %c0_i32_2 = arith.constant 0 : i32
    %5 = arith.cmpi ne, %4, %c0_i32_2 : i32
    scf.if %5 {
      %c0_78 = arith.constant 0 : index
      %c0_79 = arith.constant 0 : index
      %76 = vector.load %arg8[%c0_78, %c0_79] : memref<8x128xf32, #tpu.memory_space<vmem>>, vector<8x128xf32>
      %c0_80 = arith.constant 0 : index
      %c0_81 = arith.constant 0 : index
      %77 = vector.load %arg5[%c0_80, %c0_81] : memref<128x128xf32, #tpu.memory_space<vmem>>, vector<128x128xf32>
      %cst_82 = arith.constant dense<0.000000e+00> : vector<8x128xf32>
      %78 = tpu.matmul %76, %77, %cst_82 {dimension_numbers = #tpu.dot_dimension_numbers<[1], [0], [0], [1], [0, 0, 1, 1], [], []>} : vector<8x128xf32>, vector<128x128xf32>, vector<8x128xf32> -> vector<8x128xf32>
      %c0_83 = arith.constant 0 : index
      %c0_84 = arith.constant 0 : index
      %79 = vector.load %arg7[%c0_83, %c0_84] : memref<8x128xf32, #tpu.memory_space<vmem>>, vector<8x128xf32>
      %80 = arith.addf %79, %78 : vector<8x128xf32>
      %81 = math.tanh %80 : vector<8x128xf32>
      %c0_85 = arith.constant 0 : index
      %c0_86 = arith.constant 0 : index
      %82 = vector.load %arg8[%c0_85, %c0_86] : memref<8x128xf32, #tpu.memory_space<vmem>>, vector<8x128xf32>
      tpu.vector_store %arg8[%c0_85, %c0_86], %81 {strides = array<i32>} : memref<8x128xf32, #tpu.memory_space<vmem>>, vector<8x128xf32>,
      %c0_87 = arith.constant 0 : index
      %c0_88 = arith.constant 0 : index
      %c0_89 = arith.constant 0 : index
      %83 = vector.load %arg6[%c0_87, %c0_88, %c0_89] : memref<8x8x128xf32, #tpu.memory_space<vmem>>, vector<1x8x128xf32>
      %84 = vector.shape_cast %83 : vector<1x8x128xf32> to vector<8x128xf32>
      %85 = vector.shape_cast %81 : vector<8x128xf32> to vector<1x8x128xf32>
      tpu.vector_store %arg6[%c0_87, %c0_88, %c0_89], %85 {strides = array<i32>} : memref<8x8x128xf32, #tpu.memory_space<vmem>>, vector<1x8x128xf32>,
    } else {
    }
    %c0 = arith.constant 0 : index
    %c0_3 = arith.constant 0 : index
    %6 = vector.load %arg8[%c0, %c0_3] : memref<8x128xf32, #tpu.memory_space<vmem>>, vector<8x128xf32>
    %c0_4 = arith.constant 0 : index
    %c0_5 = arith.constant 0 : index
    %7 = vector.load %arg5[%c0_4, %c0_5] : memref<128x128xf32, #tpu.memory_space<vmem>>, vector<128x128xf32>
    %cst = arith.constant dense<0.000000e+00> : vector<8x128xf32>
    %8 = tpu.matmul %6, %7, %cst {dimension_numbers = #tpu.dot_dimension_numbers<[1], [0], [0], [1], [0, 0, 1, 1], [], []>} : vector<8x128xf32>, vector<128x128xf32>, vector<8x128xf32> -> vector<8x128xf32>
    %c0_6 = arith.constant 0 : index
    %c0_7 = arith.constant 0 : index
    %9 = vector.load %arg7[%c0_6, %c0_7] : memref<8x128xf32, #tpu.memory_space<vmem>>, vector<8x128xf32>
    %10 = arith.addf %9, %8 : vector<8x128xf32>
    %11 = math.tanh %10 : vector<8x128xf32>
    %c0_8 = arith.constant 0 : index
    %c0_9 = arith.constant 0 : index
    %12 = vector.load %arg8[%c0_8, %c0_9] : memref<8x128xf32, #tpu.memory_space<vmem>>, vector<8x128xf32>
    tpu.vector_store %arg8[%c0_8, %c0_9], %11 {strides = array<i32>} : memref<8x128xf32, #tpu.memory_space<vmem>>, vector<8x128xf32>,
    %c1 = arith.constant 1 : index
    %c0_10 = arith.constant 0 : index
    %c0_11 = arith.constant 0 : index
    %13 = vector.load %arg6[%c1, %c0_10, %c0_11] : memref<8x8x128xf32, #tpu.memory_space<vmem>>, vector<1x8x128xf32>
    %14 = vector.shape_cast %13 : vector<1x8x128xf32> to vector<8x128xf32>
    %15 = vector.shape_cast %11 : vector<8x128xf32> to vector<1x8x128xf32>
    tpu.vector_store %arg6[%c1, %c0_10, %c0_11], %15 {strides = array<i32>} : memref<8x8x128xf32, #tpu.memory_space<vmem>>, vector<1x8x128xf32>,
    %c0_12 = arith.constant 0 : index
    %c0_13 = arith.constant 0 : index
    %16 = vector.load %arg8[%c0_12, %c0_13] : memref<8x128xf32, #tpu.memory_space<vmem>>, vector<8x128xf32>
    %c0_14 = arith.constant 0 : index
    %c0_15 = arith.constant 0 : index
    %17 = vector.load %arg5[%c0_14, %c0_15] : memref<128x128xf32, #tpu.memory_space<vmem>>, vector<128x128xf32>
    %cst_16 = arith.constant dense<0.000000e+00> : vector<8x128xf32>
    %18 = tpu.matmul %16, %17, %cst_16 {dimension_numbers = #tpu.dot_dimension_numbers<[1], [0], [0], [1], [0, 0, 1, 1], [], []>} : vector<8x128xf32>, vector<128x128xf32>, vector<8x128xf32> -> vector<8x128xf32>
    %c0_17 = arith.constant 0 : index
    %c0_18 = arith.constant 0 : index
    %19 = vector.load %arg7[%c0_17, %c0_18] : memref<8x128xf32, #tpu.memory_space<vmem>>, vector<8x128xf32>
    %20 = arith.addf %19, %18 : vector<8x128xf32>
    %21 = math.tanh %20 : vector<8x128xf32>
    %c0_19 = arith.constant 0 : index
    %c0_20 = arith.constant 0 : index
    %22 = vector.load %arg8[%c0_19, %c0_20] : memref<8x128xf32, #tpu.memory_space<vmem>>, vector<8x128xf32>
    tpu.vector_store %arg8[%c0_19, %c0_20], %21 {strides = array<i32>} : memref<8x128xf32, #tpu.memory_space<vmem>>, vector<8x128xf32>,
    %c2 = arith.constant 2 : index
    %c0_21 = arith.constant 0 : index
    %c0_22 = arith.constant 0 : index
    %23 = vector.load %arg6[%c2, %c0_21, %c0_22] : memref<8x8x128xf32, #tpu.memory_space<vmem>>, vector<1x8x128xf32>
    %24 = vector.shape_cast %23 : vector<1x8x128xf32> to vector<8x128xf32>
    %25 = vector.shape_cast %21 : vector<8x128xf32> to vector<1x8x128xf32>
    tpu.vector_store %arg6[%c2, %c0_21, %c0_22], %25 {strides = array<i32>} : memref<8x8x128xf32, #tpu.memory_space<vmem>>, vector<1x8x128xf32>,
    %c0_23 = arith.constant 0 : index
    %c0_24 = arith.constant 0 : index
    %26 = vector.load %arg8[%c0_23, %c0_24] : memref<8x128xf32, #tpu.memory_space<vmem>>, vector<8x128xf32>
    %c0_25 = arith.constant 0 : index
    %c0_26 = arith.constant 0 : index
    %27 = vector.load %arg5[%c0_25, %c0_26] : memref<128x128xf32, #tpu.memory_space<vmem>>, vector<128x128xf32>
    %cst_27 = arith.constant dense<0.000000e+00> : vector<8x128xf32>
    %28 = tpu.matmul %26, %27, %cst_27 {dimension_numbers = #tpu.dot_dimension_numbers<[1], [0], [0], [1], [0, 0, 1, 1], [], []>} : vector<8x128xf32>, vector<128x128xf32>, vector<8x128xf32> -> vector<8x128xf32>
    %c0_28 = arith.constant 0 : index
    %c0_29 = arith.constant 0 : index
    %29 = vector.load %arg7[%c0_28, %c0_29] : memref<8x128xf32, #tpu.memory_space<vmem>>, vector<8x128xf32>
    %30 = arith.addf %29, %28 : vector<8x128xf32>
    %31 = math.tanh %30 : vector<8x128xf32>
    %c0_30 = arith.constant 0 : index
    %c0_31 = arith.constant 0 : index
    %32 = vector.load %arg8[%c0_30, %c0_31] : memref<8x128xf32, #tpu.memory_space<vmem>>, vector<8x128xf32>
    tpu.vector_store %arg8[%c0_30, %c0_31], %31 {strides = array<i32>} : memref<8x128xf32, #tpu.memory_space<vmem>>, vector<8x128xf32>,
    %c3 = arith.constant 3 : index
    %c0_32 = arith.constant 0 : index
    %c0_33 = arith.constant 0 : index
    %33 = vector.load %arg6[%c3, %c0_32, %c0_33] : memref<8x8x128xf32, #tpu.memory_space<vmem>>, vector<1x8x128xf32>
    %34 = vector.shape_cast %33 : vector<1x8x128xf32> to vector<8x128xf32>
    %35 = vector.shape_cast %31 : vector<8x128xf32> to vector<1x8x128xf32>
    tpu.vector_store %arg6[%c3, %c0_32, %c0_33], %35 {strides = array<i32>} : memref<8x8x128xf32, #tpu.memory_space<vmem>>, vector<1x8x128xf32>,
    %c0_34 = arith.constant 0 : index
    %c0_35 = arith.constant 0 : index
    %36 = vector.load %arg8[%c0_34, %c0_35] : memref<8x128xf32, #tpu.memory_space<vmem>>, vector<8x128xf32>
    %c0_36 = arith.constant 0 : index
    %c0_37 = arith.constant 0 : index
    %37 = vector.load %arg5[%c0_36, %c0_37] : memref<128x128xf32, #tpu.memory_space<vmem>>, vector<128x128xf32>
    %cst_38 = arith.constant dense<0.000000e+00> : vector<8x128xf32>
    %38 = tpu.matmul %36, %37, %cst_38 {dimension_numbers = #tpu.dot_dimension_numbers<[1], [0], [0], [1], [0, 0, 1, 1], [], []>} : vector<8x128xf32>, vector<128x128xf32>, vector<8x128xf32> -> vector<8x128xf32>
    %c0_39 = arith.constant 0 : index
    %c0_40 = arith.constant 0 : index
    %39 = vector.load %arg7[%c0_39, %c0_40] : memref<8x128xf32, #tpu.memory_space<vmem>>, vector<8x128xf32>
    %40 = arith.addf %39, %38 : vector<8x128xf32>
    %41 = math.tanh %40 : vector<8x128xf32>
    %c0_41 = arith.constant 0 : index
    %c0_42 = arith.constant 0 : index
    %42 = vector.load %arg8[%c0_41, %c0_42] : memref<8x128xf32, #tpu.memory_space<vmem>>, vector<8x128xf32>
    tpu.vector_store %arg8[%c0_41, %c0_42], %41 {strides = array<i32>} : memref<8x128xf32, #tpu.memory_space<vmem>>, vector<8x128xf32>,
    %c4 = arith.constant 4 : index
    %c0_43 = arith.constant 0 : index
    %c0_44 = arith.constant 0 : index
    %43 = vector.load %arg6[%c4, %c0_43, %c0_44] : memref<8x8x128xf32, #tpu.memory_space<vmem>>, vector<1x8x128xf32>
    %44 = vector.shape_cast %43 : vector<1x8x128xf32> to vector<8x128xf32>
    %45 = vector.shape_cast %41 : vector<8x128xf32> to vector<1x8x128xf32>
    tpu.vector_store %arg6[%c4, %c0_43, %c0_44], %45 {strides = array<i32>} : memref<8x8x128xf32, #tpu.memory_space<vmem>>, vector<1x8x128xf32>,
    %c0_45 = arith.constant 0 : index
    %c0_46 = arith.constant 0 : index
    %46 = vector.load %arg8[%c0_45, %c0_46] : memref<8x128xf32, #tpu.memory_space<vmem>>, vector<8x128xf32>
    %c0_47 = arith.constant 0 : index
    %c0_48 = arith.constant 0 : index
    %47 = vector.load %arg5[%c0_47, %c0_48] : memref<128x128xf32, #tpu.memory_space<vmem>>, vector<128x128xf32>
    %cst_49 = arith.constant dense<0.000000e+00> : vector<8x128xf32>
    %48 = tpu.matmul %46, %47, %cst_49 {dimension_numbers = #tpu.dot_dimension_numbers<[1], [0], [0], [1], [0, 0, 1, 1], [], []>} : vector<8x128xf32>, vector<128x128xf32>, vector<8x128xf32> -> vector<8x128xf32>
    %c0_50 = arith.constant 0 : index
    %c0_51 = arith.constant 0 : index
    %49 = vector.load %arg7[%c0_50, %c0_51] : memref<8x128xf32, #tpu.memory_space<vmem>>, vector<8x128xf32>
    %50 = arith.addf %49, %48 : vector<8x128xf32>
    %51 = math.tanh %50 : vector<8x128xf32>
    %c0_52 = arith.constant 0 : index
    %c0_53 = arith.constant 0 : index
    %52 = vector.load %arg8[%c0_52, %c0_53] : memref<8x128xf32, #tpu.memory_space<vmem>>, vector<8x128xf32>
    tpu.vector_store %arg8[%c0_52, %c0_53], %51 {strides = array<i32>} : memref<8x128xf32, #tpu.memory_space<vmem>>, vector<8x128xf32>,
    %c5 = arith.constant 5 : index
    %c0_54 = arith.constant 0 : index
    %c0_55 = arith.constant 0 : index
    %53 = vector.load %arg6[%c5, %c0_54, %c0_55] : memref<8x8x128xf32, #tpu.memory_space<vmem>>, vector<1x8x128xf32>
    %54 = vector.shape_cast %53 : vector<1x8x128xf32> to vector<8x128xf32>
    %55 = vector.shape_cast %51 : vector<8x128xf32> to vector<1x8x128xf32>
    tpu.vector_store %arg6[%c5, %c0_54, %c0_55], %55 {strides = array<i32>} : memref<8x8x128xf32, #tpu.memory_space<vmem>>, vector<1x8x128xf32>,
    %c0_56 = arith.constant 0 : index
    %c0_57 = arith.constant 0 : index
    %56 = vector.load %arg8[%c0_56, %c0_57] : memref<8x128xf32, #tpu.memory_space<vmem>>, vector<8x128xf32>
    %c0_58 = arith.constant 0 : index
    %c0_59 = arith.constant 0 : index
    %57 = vector.load %arg5[%c0_58, %c0_59] : memref<128x128xf32, #tpu.memory_space<vmem>>, vector<128x128xf32>
    %cst_60 = arith.constant dense<0.000000e+00> : vector<8x128xf32>
    %58 = tpu.matmul %56, %57, %cst_60 {dimension_numbers = #tpu.dot_dimension_numbers<[1], [0], [0], [1], [0, 0, 1, 1], [], []>} : vector<8x128xf32>, vector<128x128xf32>, vector<8x128xf32> -> vector<8x128xf32>
    %c0_61 = arith.constant 0 : index
    %c0_62 = arith.constant 0 : index
    %59 = vector.load %arg7[%c0_61, %c0_62] : memref<8x128xf32, #tpu.memory_space<vmem>>, vector<8x128xf32>
    %60 = arith.addf %59, %58 : vector<8x128xf32>
    %61 = math.tanh %60 : vector<8x128xf32>
    %c0_63 = arith.constant 0 : index
    %c0_64 = arith.constant 0 : index
    %62 = vector.load %arg8[%c0_63, %c0_64] : memref<8x128xf32, #tpu.memory_space<vmem>>, vector<8x128xf32>
    tpu.vector_store %arg8[%c0_63, %c0_64], %61 {strides = array<i32>} : memref<8x128xf32, #tpu.memory_space<vmem>>, vector<8x128xf32>,
    %c6 = arith.constant 6 : index
    %c0_65 = arith.constant 0 : index
    %c0_66 = arith.constant 0 : index
    %63 = vector.load %arg6[%c6, %c0_65, %c0_66] : memref<8x8x128xf32, #tpu.memory_space<vmem>>, vector<1x8x128xf32>
    %64 = vector.shape_cast %63 : vector<1x8x128xf32> to vector<8x128xf32>
    %65 = vector.shape_cast %61 : vector<8x128xf32> to vector<1x8x128xf32>
    tpu.vector_store %arg6[%c6, %c0_65, %c0_66], %65 {strides = array<i32>} : memref<8x8x128xf32, #tpu.memory_space<vmem>>, vector<1x8x128xf32>,
    %c0_67 = arith.constant 0 : index
    %c0_68 = arith.constant 0 : index
    %66 = vector.load %arg8[%c0_67, %c0_68] : memref<8x128xf32, #tpu.memory_space<vmem>>, vector<8x128xf32>
    %c0_69 = arith.constant 0 : index
    %c0_70 = arith.constant 0 : index
    %67 = vector.load %arg5[%c0_69, %c0_70] : memref<128x128xf32, #tpu.memory_space<vmem>>, vector<128x128xf32>
    %cst_71 = arith.constant dense<0.000000e+00> : vector<8x128xf32>
    %68 = tpu.matmul %66, %67, %cst_71 {dimension_numbers = #tpu.dot_dimension_numbers<[1], [0], [0], [1], [0, 0, 1, 1], [], []>} : vector<8x128xf32>, vector<128x128xf32>, vector<8x128xf32> -> vector<8x128xf32>
    %c0_72 = arith.constant 0 : index
    %c0_73 = arith.constant 0 : index
    %69 = vector.load %arg7[%c0_72, %c0_73] : memref<8x128xf32, #tpu.memory_space<vmem>>, vector<8x128xf32>
    %70 = arith.addf %69, %68 : vector<8x128xf32>
    %71 = math.tanh %70 : vector<8x128xf32>
    %c0_74 = arith.constant 0 : index
    %c0_75 = arith.constant 0 : index
    %72 = vector.load %arg8[%c0_74, %c0_75] : memref<8x128xf32, #tpu.memory_space<vmem>>, vector<8x128xf32>
    tpu.vector_store %arg8[%c0_74, %c0_75], %71 {strides = array<i32>} : memref<8x128xf32, #tpu.memory_space<vmem>>, vector<8x128xf32>,
    %c7 = arith.constant 7 : index
    %c0_76 = arith.constant 0 : index
    %c0_77 = arith.constant 0 : index
    %73 = vector.load %arg6[%c7, %c0_76, %c0_77] : memref<8x8x128xf32, #tpu.memory_space<vmem>>, vector<1x8x128xf32>
    %74 = vector.shape_cast %73 : vector<1x8x128xf32> to vector<8x128xf32>
    %75 = vector.shape_cast %71 : vector<8x128xf32> to vector<1x8x128xf32>
    tpu.vector_store %arg6[%c7, %c0_76, %c0_77], %75 {strides = array<i32>} : memref<8x8x128xf32, #tpu.memory_space<vmem>>, vector<1x8x128xf32>,
    return
  }
  func.func @transform_0(%arg0: i32, %arg1: i32) -> (i32, i32) {
    %c0_i32 = arith.constant 0 : i32
    %c0_i32_0 = arith.constant 0 : i32
    return %arg0, %c0_i32 : i32, i32
  }
  func.func @transform_1(%arg0: i32, %arg1: i32) -> (i32, i32) {
    %c0_i32 = arith.constant 0 : i32
    %c0_i32_0 = arith.constant 0 : i32
    %c0_i32_1 = arith.constant 0 : i32
    return %c0_i32, %c0_i32_0 : i32, i32
  }
  func.func @transform_2(%arg0: i32, %arg1: i32) -> (i32, i32) {
    %c0_i32 = arith.constant 0 : i32
    %c0_i32_0 = arith.constant 0 : i32
    %c0_i32_1 = arith.constant 0 : i32
    return %c0_i32, %c0_i32_0 : i32, i32
  }
  func.func @transform_3(%arg0: i32, %arg1: i32) -> (i32, i32) {
    %c0_i32 = arith.constant 0 : i32
    %c0_i32_0 = arith.constant 0 : i32
    %c0_i32_1 = arith.constant 0 : i32
    return %c0_i32, %c0_i32_0 : i32, i32
  }
  func.func @transform_4(%arg0: i32, %arg1: i32) -> (i32, i32, i32) {
    %c0_i32 = arith.constant 0 : i32
    %c0_i32_0 = arith.constant 0 : i32
    return %arg1, %arg0, %c0_i32 : i32, i32, i32
  }
}

</mosaic_0001>

<llo_original>
// kernel: tpu_custom_call.1
$region0: #{tpu_custom_call.1}
  #allocation0 [shape = 'u32[]', space=smem, size = 0x4, offset = 0x4, fixed_abs, tag = 'smem constant byte address 0x4 - core index']
  #allocation1 [shape = 'u32[72,128]{1,0:T(1,128)}', space=vmem, size = 0x9000, scoped, tag = 'internal scratch']
  #allocation2 [shape = 'f32[8,128]{1,0:T(8,128)}', space=vmem, size = 0x1000, scoped, tag = 'scratch operand']
  #allocation3 [shape = 'f32[8,128]{1,0:T(8,128)}', space=vmem, size = 0x1000, scoped, tag = 'scratch operand']
  %s0 = inlined_call_operand.hbm [shape: f32[16,16], index: 0, kind: input, shape index: {}]
  %s1 = inlined_call_operand.hbm [shape: f32[16,128], index: 1, kind: input, shape index: {}]
  %s2 = inlined_call_operand.vmem [shape: f32[1,128], index: 2, kind: input, shape index: {}]
  %s3 = inlined_call_operand.hbm [shape: f32[128,128], index: 3, kind: input, shape index: {}]
  %s4 = inlined_call_operand.hbm [shape: f32[8,16,128], index: 4, kind: output, shape index: {}]
  %s5 = sld [smem:[#allocation0]]
  $region69: #{tpu_custom_call.1} parent=0
    _
  %s7 = ssub.s32 1, %s5
  %s8 = scalar_select 0, %s7, %s5
  $region1: #{tpu_custom_call.1} parent=0
    #allocation4 [shape = 'u8[8192]{0}', space=vmem, size = 0x2000, scoped, tag = 'input window, operand 0']
    #allocation5 [shape = 's32[2]{0}', space=sflag, size = 0x8, scoped, tag = 'scoped memory for tpu_custom_call.1']
    #allocation6 [shape = 's32[2]{0}', space=sflag, size = 0x8, scoped, tag = 'scoped memory for tpu_custom_call.1']
    #allocation7 [shape = 'u8[8192]{0}', space=vmem, size = 0x2000, scoped, tag = 'input window, operand 1, single buffered']
    #allocation8 [shape = 's32[1]{0}', space=sflag, size = 0x4, scoped, tag = 'scoped memory for tpu_custom_call.1']
    #allocation9 [shape = 'u8[65536]{0}', space=vmem, size = 0x10000, scoped, tag = 'input window, operand 3, single buffered']
    #allocation10 [shape = 'u8[65536]{0}', space=vmem, size = 0x10000, scoped, tag = 'output window, operand 0']
    %9 = vsyncpa [#allocation5], 0
    %s10 = scalar_lea.sflag [#allocation5], 1
    %11 = vsyncpa %s10, 0
    %12 = vsyncpa [#allocation8], 0
    %13 = vsyncpa [#allocation6], 0
    %s14 = scalar_lea.sflag [#allocation6], 1
    %15 = vsyncpa %s14, 0
    loop: start=0, step=1, limit=4
    $region2: #{tpu_custom_call.1} parent=1 // loop_pre_header
      _
    $region3: #{tpu_custom_call.1} parent=1 // loop_header
      %s17 = sphi 0, %s21
      %p18 = scmp.ge.s32.totalorder %s17, 4
      %s24 = sphi 0, %s36
      %s25 = sphi 0, %s32
      %s26 = sphi 0, %s24
      %s27 = sphi 0, %s25
      %s28 = sphi 0, %s26
      %s29 = sphi 0, %s27
      %s39 = sphi 0, %s41
      %s42 = sphi 0, %s39
      %s43 = sphi 0, %s42
      %s59 = sphi 0, %s43
      %s63 = sphi 0, %s63
      %s65 = sphi 0, %s63
      %s66 = sphi 0, %s65
      %s80 = sphi 0, %s66
      %s84 = sphi 0, %s84
      %s86 = sphi 0, %s84
      %s87 = sphi 0, %s86
      %s101 = sphi 0, %s87
      %s105 = sphi 0, %s105
      %s107 = sphi 0, %s105
      %s108 = sphi 0, %s107
      %s122 = sphi 0, %s108
      %s130 = sphi 0, %s132
      %s133 = sphi 0, %s130
      %s134 = sphi 0, %s133
      %s150 = sphi 0, %s134
    $region4: #{tpu_custom_call.1} parent=1 // loop_header_branch
      %20 = sbr.rel (%p18) target = $region8
    $region5: #{tpu_custom_call.1} parent=1 // loop_body
      %s22 = ssub.s32 %s17, 1
      %s23 = ssub.s32 %s17, 2
      %s30 = sadd.s32 1, %s25
      %p31 = scmp.ge.s32.totalorder %s30, 1
      %s32 = scalar_select %p31, 0, %s30
      %s33 = sadd.s32 1, %s24
      %s34 = scalar_select %p31, %s33, %s24
      %p35 = scmp.ge.s32.totalorder %s34, 2
      %s36 = scalar_select %p35, 0, %s34
      %s37 = ssub.s32 %s24, %s36
      %p38 = scmp.eq.s32.totalorder %s37, 0
      %s40 = sadd.s32 %s39, 1
      %s41 = scalar_select %p38, %s39, %s40
      %p44 = pneg %p38
      %p45 = scmp.eq.s32.totalorder %s17, 1
      %p46 = por %p44, %p45
      %p47 = scmp.ne.s32.totalorder %s39, %s42
      %p48 = scmp.eq.s32.totalorder %s17, 0
      %p49 = por %p47, %p48
      %p50 = scmp.ne.s32.totalorder %s39, %s42
      %p51 = scmp.eq.s32.totalorder %s22, 1
      %p52 = por %p50, %p51
      %p53 = scmp.ne.s32.totalorder %s42, %s43
      %p54 = scmp.eq.s32.totalorder %s22, 0
      %p55 = por %p53, %p54
      %p56 = scmp.ne.s32.totalorder %s42, %s43
      %p57 = scmp.eq.s32.totalorder %s23, 1
      %p58 = por %p56, %p57
      %p60 = scmp.ne.s32.totalorder %s43, %s59
      %p61 = scmp.eq.s32.totalorder %s23, 0
      %p62 = por %p60, %p61
      %s64 = sadd.s32 %s63, 1
      %p67 = scmp.eq.s32.totalorder %s17, 1
      %p68 = scmp.ne.s32.totalorder %s63, %s65
      %p69 = scmp.eq.s32.totalorder %s17, 0
      %p70 = por %p68, %p69
      %p71 = scmp.ne.s32.totalorder %s63, %s65
      %p72 = scmp.eq.s32.totalorder %s22, 1
      %p73 = por %p71, %p72
      %p74 = scmp.ne.s32.totalorder %s65, %s66
      %p75 = scmp.eq.s32.totalorder %s22, 0
      %p76 = por %p74, %p75
      %p77 = scmp.ne.s32.totalorder %s65, %s66
      %p78 = scmp.eq.s32.totalorder %s23, 1
      %p79 = por %p77, %p78
      %p81 = scmp.ne.s32.totalorder %s66, %s80
      %p82 = scmp.eq.s32.totalorder %s23, 0
      %p83 = por %p81, %p82
      %s85 = sadd.s32 %s84, 1
      %p88 = scmp.eq.s32.totalorder %s17, 1
      %p89 = scmp.ne.s32.totalorder %s84, %s86
      %p90 = scmp.eq.s32.totalorder %s17, 0
      %p91 = por %p89, %p90
      %p92 = scmp.ne.s32.totalorder %s84, %s86
      %p93 = scmp.eq.s32.totalorder %s22, 1
      %p94 = por %p92, %p93
      %p95 = scmp.ne.s32.totalorder %s86, %s87
      %p96 = scmp.eq.s32.totalorder %s22, 0
      %p97 = por %p95, %p96
      %p98 = scmp.ne.s32.totalorder %s86, %s87
      %p99 = scmp.eq.s32.totalorder %s23, 1
      %p100 = por %p98, %p99
      %p102 = scmp.ne.s32.totalorder %s87, %s101
      %p103 = scmp.eq.s32.totalorder %s23, 0
      %p104 = por %p102, %p103
      %s106 = sadd.s32 %s105, 1
      %p109 = scmp.eq.s32.totalorder %s17, 1
      %p110 = scmp.ne.s32.totalorder %s105, %s107
      %p111 = scmp.eq.s32.totalorder %s17, 0
      %p112 = por %p110, %p111
      %p113 = scmp.ne.s32.totalorder %s105, %s107
      %p114 = scmp.eq.s32.totalorder %s22, 1
      %p115 = por %p113, %p114
      %p116 = scmp.ne.s32.totalorder %s107, %s108
      %p117 = scmp.eq.s32.totalorder %s22, 0
      %p118 = por %p116, %p117
      %p119 = scmp.ne.s32.totalorder %s107, %s108
      %p120 = scmp.eq.s32.totalorder %s23, 1
      %p121 = por %p119, %p120
      %p123 = scmp.ne.s32.totalorder %s108, %s122
      %p124 = scmp.eq.s32.totalorder %s23, 0
      %p125 = por %p123, %p124
      %s126 = ssub.s32 %s25, %s32
      %s127 = ssub.s32 %s24, %s36
      %s128 = sor.u32 %s126, %s127
      %p129 = scmp.eq.s32.totalorder %s128, 0
      %s131 = sadd.s32 %s130, 1
      %s132 = scalar_select %p129, %s130, %s131
      %p135 = pneg %p129
      %p136 = scmp.eq.s32.totalorder %s17, 1
      %p137 = por %p135, %p136
      %p138 = scmp.ne.s32.totalorder %s130, %s133
      %p139 = scmp.eq.s32.totalorder %s17, 0
      %p140 = por %p138, %p139
      %p141 = scmp.ne.s32.totalorder %s130, %s133
      %p142 = scmp.eq.s32.totalorder %s22, 1
      %p143 = por %p141, %p142
      %p144 = scmp.ne.s32.totalorder %s133, %s134
      %p145 = scmp.eq.s32.totalorder %s22, 0
      %p146 = por %p144, %p145
      %p147 = scmp.ne.s32.totalorder %s133, %s134
      %p148 = scmp.eq.s32.totalorder %s23, 1
      %p149 = por %p147, %p148
      %p151 = scmp.ne.s32.totalorder %s134, %s150
      %p152 = scmp.eq.s32.totalorder %s23, 0
      %p153 = por %p151, %p152
      %p154 = scmp.le.s32.totalorder 1, %s17
      %p155 = scmp.lt.s32.totalorder %s17, 3
      %p156 = pnand %p154, %p155
      %p157 = pneg %p156
      // Predicated region
      $region9: #{tpu_custom_call.1} parent=5 // pred_check
        _
      $region10: #{tpu_custom_call.1} parent=5 // pred_check_branch
        %159 = sbr.rel (%p156) target = $region12
      $region11: #{tpu_custom_call.1} parent=5 // pred_region
        %s160 = ssub.s32 %s17, 1
        // Predicated region
        $region13: #{tpu_custom_call.1} parent=11 // pred_check
          %p161 = pneg %p76
        $region14: #{tpu_custom_call.1} parent=11 // pred_check_branch
          %163 = sbr.rel (%p161) target = $region16
        $region15: #{tpu_custom_call.1} parent=11 // pred_region
          %165 = vsyncadd [#allocation8], 0
          %s166 = sshll.u32 %s1, 4
          %s167 = int_to_ptr.hbm [resolvable:$true] %s166
          %s168 = sshll.u32 [#allocation7], 4
          %s169 = int_to_ptr.vmem [resolvable:$true] %s168
          %174 = dma.hbm_to_vmem [thread:$0]  %s167, 256, %s169, [#allocation8], 128, 128, 8
        $region16: #{tpu_custom_call.1} parent=11 // pred_fallthru
          _
        // Predicated region
        $region17: #{tpu_custom_call.1} parent=11 // pred_check
          %p175 = pneg %p97
        $region18: #{tpu_custom_call.1} parent=11 // pred_check_branch
          %177 = sbr.rel (%p175) target = $region20
        $region19: #{tpu_custom_call.1} parent=11 // pred_region
          _
        $region20: #{tpu_custom_call.1} parent=11 // pred_fallthru
          _
        // Predicated region
        $region21: #{tpu_custom_call.1} parent=11 // pred_check
          %p178 = pneg %p118
        $region22: #{tpu_custom_call.1} parent=11 // pred_check_branch
          %180 = sbr.rel (%p178) target = $region24
        $region23: #{tpu_custom_call.1} parent=11 // pred_region
          %182 = vsyncadd [#allocation8], 0
          %s183 = sshll.u32 %s3, 4
          %s184 = int_to_ptr.hbm [resolvable:$true] %s183
          %s185 = sshll.u32 [#allocation9], 4
          %s186 = int_to_ptr.vmem [resolvable:$true] %s185
          %191 = dma.hbm_to_vmem [thread:$0]  %s184, 2048, %s186, [#allocation8], 128, 128, 8
        $region24: #{tpu_custom_call.1} parent=11 // pred_fallthru
          _
      $region12: #{tpu_custom_call.1} parent=5 // pred_fallthru
        _
      %p192 = scmp.lt.s32.totalorder %s17, 2
      // Predicated region
      $region25: #{tpu_custom_call.1} parent=5 // pred_check
        %p193 = pneg %p192
      $region26: #{tpu_custom_call.1} parent=5 // pred_check_branch
        %195 = sbr.rel (%p193) target = $region28
      $region27: #{tpu_custom_call.1} parent=5 // pred_region
        // Predicated region
        $region29: #{tpu_custom_call.1} parent=27 // pred_check
          %p196 = pneg %p49
        $region30: #{tpu_custom_call.1} parent=27 // pred_check_branch
          %198 = sbr.rel (%p196) target = $region32
        $region31: #{tpu_custom_call.1} parent=27 // pred_region
          %s199 = sand.u32 %s39, 1
          %s200 = scalar_lea.sflag [#allocation5], %s199
          %s201 = sand.u32 %s39, 1
          %s202 = smul.addr %s201, 8
          %s203 = scalar_lea.vmem [#allocation4], %s202
          %205 = vsyncadd %s200, 0
          %s206 = smul.addr %s24, 8
          %s207 = scalar_lea.hbm %s0, %s206
          %s209 = sshll.u32 %s207, 4
          %s210 = int_to_ptr.hbm [resolvable:$true] %s209
          %s211 = sshll.u32 %s203, 4
          %s212 = int_to_ptr.vmem [resolvable:$true] %s211
          %214 = dma.hbm_to_vmem [thread:$0]  %s210, 128, %s212, %s200
        $region32: #{tpu_custom_call.1} parent=27 // pred_fallthru
          _
      $region28: #{tpu_custom_call.1} parent=5 // pred_fallthru
        _
      %p215 = scmp.le.s32.totalorder 1, %s17
      %p216 = scmp.lt.s32.totalorder %s17, 3
      %p217 = pnand %p215, %p216
      %p218 = pneg %p217
      // Predicated region
      $region33: #{tpu_custom_call.1} parent=5 // pred_check
        _
      $region34: #{tpu_custom_call.1} parent=5 // pred_check_branch
        %220 = sbr.rel (%p217) target = $region36
      $region35: #{tpu_custom_call.1} parent=5 // pred_region
        %s221 = ssub.s32 %s17, 1
        %s222 = sand.u32 %s42, 1
        %s223 = scalar_lea.sflag [#allocation5], %s222
        %s224 = sand.u32 %s42, 1
        %s225 = smul.addr %s224, 8
        %s226 = scalar_lea.vmem [#allocation4], %s225
        // Predicated region
        $region37: #{tpu_custom_call.1} parent=35 // pred_check
          %p227 = pneg %p55
        $region38: #{tpu_custom_call.1} parent=35 // pred_check_branch
          %229 = sbr.rel (%p227) target = $region40
        $region39: #{tpu_custom_call.1} parent=35 // pred_region
          %231 = dma.done %s223, 128
        $region40: #{tpu_custom_call.1} parent=35 // pred_fallthru
          _
        // Predicated region
        $region41: #{tpu_custom_call.1} parent=35 // pred_check
          %p232 = pneg %p76
        $region42: #{tpu_custom_call.1} parent=35 // pred_check_branch
          %234 = sbr.rel (%p232) target = $region44
        $region43: #{tpu_custom_call.1} parent=35 // pred_region
          %236 = dma.done [#allocation8], 256
        $region44: #{tpu_custom_call.1} parent=35 // pred_fallthru
          _
        // Predicated region
        $region45: #{tpu_custom_call.1} parent=35 // pred_check
          %p237 = pneg %p118
        $region46: #{tpu_custom_call.1} parent=35 // pred_check_branch
          %239 = sbr.rel (%p237) target = $region48
        $region47: #{tpu_custom_call.1} parent=35 // pred_region
          %241 = dma.done [#allocation8], 2048
        $region48: #{tpu_custom_call.1} parent=35 // pred_fallthru
          _
        %s242 = sand.u32 %s42, 1
        %s243 = scalar_lea.sflag [#allocation5], %s242
        %s244 = sand.u32 %s42, 1
        %s245 = smul.addr %s244, 8
        %s246 = scalar_lea.vmem [#allocation4], %s245
        %p247 = pneg %p55
        %p248 = pneg %p52
        %p249 = pneg %p76
        %p250 = pneg %p73
        %p251 = pneg %p97
        %p252 = pneg %p94
        %p253 = pneg %p118
        %p254 = pneg %p115
        %p255 = pneg %p146
        %p256 = pneg %p143
        %s257 = sand.u32 %s133, 1
        %s258 = scalar_lea.sflag [#allocation6], %s257
        %s259 = sand.u32 %s133, 1
        %s260 = smul.addr %s259, 64
        %s261 = scalar_lea.vmem [#allocation10], %s260
        %s262 = smul.u32 8, %s27
        %p263 = scmp.eq.s32.totalorder %s27, 0
        // Predicated region
        $region49: #{tpu_custom_call.1} parent=35 // pred_check
          %p264 = pneg %p263
        $region50: #{tpu_custom_call.1} parent=35 // pred_check_branch
          %266 = sbr.rel (%p264) target = $region52
        $region51: #{tpu_custom_call.1} parent=35 // pred_region
          %v267 = vld [vmem:[%s226] sm:$0xff]
          %v268 = vld [vmem:[#allocation7] sm:$0xff]
          %v269 = vld [vmem:[#allocation7 + $0x8] sm:$0xff]
          %v270 = vld [vmem:[%s2] sm:$0x1]
          %v272 = vperm.slane %v270, 0
          %vm274 = vcmask 130048
          %v276 = vsel %vm274, %v267, 0
          %278 = vmatpush.msra.mxu0 0.0
          %279 = vmatpush.msra.mxu0 0.0
          %280 = vmatpush.msra.mxu0 0.0
          %281 = vmatpush.msra.mxu0 0.0
          %282 = vmatpush.msra.mxu0 0.0
          %283 = vmatpush.msra.mxu0 0.0
          %284 = vmatpush.msra.mxu0 0.0
          %285 = vmatpush.msra.mxu0 0.0
          %286 = vmatpush.msra.mxu0 0.0
          %287 = vmatpush.msra.mxu0 0.0
          %288 = vmatpush.msra.mxu0 0.0
          %289 = vmatpush.msra.mxu0 0.0
          %290 = vmatpush.msra.mxu0 0.0
          %291 = vmatpush.msra.mxu0 0.0
          %292 = vmatpush.msra.mxu0 %v269
          %293 = vmatpush.msra.mxu0 %v268
          %294 = vmatmul.f32.gmra.mxu0 %v276
          %v295 = vpop.f32.mrf.mxu0
          %v296 = vadd.f32 %v272, %v295
          %297 = vdwg.mxu0
          %298 = vst [vmem:[#allocation2] sm:$0xff] %v296
          %v299 = vtanh.pop %v296
          %300 = vst [vmem:[#allocation3] sm:$0xff] %v299
          %301 = vst [vmem:[%s261] sm:$0xff] %v299
        $region52: #{tpu_custom_call.1} parent=35 // pred_fallthru
          _
        %p302 = scmp.gt.s32.totalorder %s27, 0
        // Predicated region
        $region53: #{tpu_custom_call.1} parent=35 // pred_check
          %p303 = pneg %p302
        $region54: #{tpu_custom_call.1} parent=35 // pred_check_branch
          %305 = sbr.rel (%p303) target = $region56
        $region55: #{tpu_custom_call.1} parent=35 // pred_region
          %v306 = vld [vmem:[#allocation3] sm:$0xff]
          %v307 = vld [vmem:[#allocation9] sm:$0xff]
          %v308 = vld [vmem:[#allocation9 + $0x8] sm:$0xff]
          %v309 = vld [vmem:[#allocation9 + $0x10] sm:$0xff]
          %v310 = vld [vmem:[#allocation9 + $0x18] sm:$0xff]
          %v311 = vld [vmem:[#allocation9 + $0x20] sm:$0xff]
          %v312 = vld [vmem:[#allocation9 + $0x28] sm:$0xff]
          %v313 = vld [vmem:[#allocation9 + $0x30] sm:$0xff]
          %v314 = vld [vmem:[#allocation9 + $0x38] sm:$0xff]
          %v315 = vld [vmem:[#allocation9 + $0x40] sm:$0xff]
          %v316 = vld [vmem:[#allocation9 + $0x48] sm:$0xff]
          %v317 = vld [vmem:[#allocation9 + $0x50] sm:$0xff]
          %v318 = vld [vmem:[#allocation9 + $0x58] sm:$0xff]
          %v319 = vld [vmem:[#allocation9 + $0x60] sm:$0xff]
          %v320 = vld [vmem:[#allocation9 + $0x68] sm:$0xff]
          %v321 = vld [vmem:[#allocation9 + $0x70] sm:$0xff]
          %v322 = vld [vmem:[#allocation9 + $0x78] sm:$0xff]
          %323 = vmatpush.msra.mxu0 %v322
          %324 = vmatpush.msra.mxu0 %v321
          %325 = vmatpush.msra.mxu0 %v320
          %326 = vmatpush.msra.mxu0 %v319
          %327 = vmatpush.msra.mxu0 %v318
          %328 = vmatpush.msra.mxu0 %v317
          %329 = vmatpush.msra.mxu0 %v316
          %330 = vmatpush.msra.mxu0 %v315
          %331 = vmatpush.msra.mxu0 %v314
          %332 = vmatpush.msra.mxu0 %v313
          %333 = vmatpush.msra.mxu0 %v312
          %334 = vmatpush.msra.mxu0 %v311
          %335 = vmatpush.msra.mxu0 %v310
          %336 = vmatpush.msra.mxu0 %v309
          %337 = vmatpush.msra.mxu0 %v308
          %338 = vmatpush.msra.mxu0 %v307
          %339 = vmatmul.f32.gmra.mxu0 %v306
          %v340 = vpop.f32.mrf.mxu0
          %v341 = vadd.f32 0.0, %v340
          %342 = vdwg.mxu0
          %v343 = vld [vmem:[#allocation2] sm:$0xff]
          %v344 = vadd.f32 %v343, %v341
          %v345 = vtanh.pop %v344
          %346 = vst [vmem:[#allocation3] sm:$0xff] %v345
          %347 = vst [vmem:[%s261] sm:$0xff] %v345
        $region56: #{tpu_custom_call.1} parent=35 // pred_fallthru
          _
        %v348 = vld [vmem:[#allocation3] sm:$0xff]
        %v349 = vld [vmem:[#allocation9] sm:$0xff]
        %v350 = vld [vmem:[#allocation9 + $0x8] sm:$0xff]
        %v351 = vld [vmem:[#allocation9 + $0x10] sm:$0xff]
        %v352 = vld [vmem:[#allocation9 + $0x18] sm:$0xff]
        %v353 = vld [vmem:[#allocation9 + $0x20] sm:$0xff]
        %v354 = vld [vmem:[#allocation9 + $0x28] sm:$0xff]
        %v355 = vld [vmem:[#allocation9 + $0x30] sm:$0xff]
        %v356 = vld [vmem:[#allocation9 + $0x38] sm:$0xff]
        %v357 = vld [vmem:[#allocation9 + $0x40] sm:$0xff]
        %v358 = vld [vmem:[#allocation9 + $0x48] sm:$0xff]
        %v359 = vld [vmem:[#allocation9 + $0x50] sm:$0xff]
        %v360 = vld [vmem:[#allocation9 + $0x58] sm:$0xff]
        %v361 = vld [vmem:[#allocation9 + $0x60] sm:$0xff]
        %v362 = vld [vmem:[#allocation9 + $0x68] sm:$0xff]
        %v363 = vld [vmem:[#allocation9 + $0x70] sm:$0xff]
        %v364 = vld [vmem:[#allocation9 + $0x78] sm:$0xff]
        %365 = vmatpush.msra.mxu0 %v364
        %366 = vmatpush.msra.mxu0 %v363
        %367 = vmatpush.msra.mxu0 %v362
        %368 = vmatpush.msra.mxu0 %v361
        %369 = vmatpush.msra.mxu0 %v360
        %370 = vmatpush.msra.mxu0 %v359
        %371 = vmatpush.msra.mxu0 %v358
        %372 = vmatpush.msra.mxu0 %v357
        %373 = vmatpush.msra.mxu0 %v356
        %374 = vmatpush.msra.mxu0 %v355
        %375 = vmatpush.msra.mxu0 %v354
        %376 = vmatpush.msra.mxu0 %v353
        %377 = vmatpush.msra.mxu0 %v352
        %378 = vmatpush.msra.mxu0 %v351
        %379 = vmatpush.msra.mxu0 %v350
        %380 = vmatpush.msra.mxu0 %v349
        %381 = vmatmul.f32.gmra.mxu0 %v348
        %v382 = vpop.f32.mrf.mxu0
        %v383 = vadd.f32 0.0, %v382
        %384 = vdwg.mxu0
        %v385 = vld [vmem:[#allocation2] sm:$0xff]
        %v386 = vadd.f32 %v385, %v383
        %v387 = vtanh.pop %v386
        %388 = vst [vmem:[#allocation3] sm:$0xff] %v387
        %s389 = scalar_lea.vmem %s261, 8 [#allocation10]
        %390 = vst [vmem:[%s389] sm:$0xff] %v387
        %v391 = vld [vmem:[#allocation3] sm:$0xff]
        %v392 = vld [vmem:[#allocation9] sm:$0xff]
        %v393 = vld [vmem:[#allocation9 + $0x8] sm:$0xff]
        %v394 = vld [vmem:[#allocation9 + $0x10] sm:$0xff]
        %v395 = vld [vmem:[#allocation9 + $0x18] sm:$0xff]
        %v396 = vld [vmem:[#allocation9 + $0x20] sm:$0xff]
        %v397 = vld [vmem:[#allocation9 + $0x28] sm:$0xff]
        %v398 = vld [vmem:[#allocation9 + $0x30] sm:$0xff]
        %v399 = vld [vmem:[#allocation9 + $0x38] sm:$0xff]
        %v400 = vld [vmem:[#allocation9 + $0x40] sm:$0xff]
        %v401 = vld [vmem:[#allocation9 + $0x48] sm:$0xff]
        %v402 = vld [vmem:[#allocation9 + $0x50] sm:$0xff]
        %v403 = vld [vmem:[#allocation9 + $0x58] sm:$0xff]
        %v404 = vld [vmem:[#allocation9 + $0x60] sm:$0xff]
        %v405 = vld [vmem:[#allocation9 + $0x68] sm:$0xff]
        %v406 = vld [vmem:[#allocation9 + $0x70] sm:$0xff]
        %v407 = vld [vmem:[#allocation9 + $0x78] sm:$0xff]
        %408 = vmatpush.msra.mxu0 %v407
        %409 = vmatpush.msra.mxu0 %v406
        %410 = vmatpush.msra.mxu0 %v405
        %411 = vmatpush.msra.mxu0 %v404
        %412 = vmatpush.msra.mxu0 %v403
        %413 = vmatpush.msra.mxu0 %v402
        %414 = vmatpush.msra.mxu0 %v401
        %415 = vmatpush.msra.mxu0 %v400
        %416 = vmatpush.msra.mxu0 %v399
        %417 = vmatpush.msra.mxu0 %v398
        %418 = vmatpush.msra.mxu0 %v397
        %419 = vmatpush.msra.mxu0 %v396
        %420 = vmatpush.msra.mxu0 %v395
        %421 = vmatpush.msra.mxu0 %v394
        %422 = vmatpush.msra.mxu0 %v393
        %423 = vmatpush.msra.mxu0 %v392
        %424 = vmatmul.f32.gmra.mxu0 %v391
        %v425 = vpop.f32.mrf.mxu0
        %v426 = vadd.f32 0.0, %v425
        %427 = vdwg.mxu0
        %v428 = vld [vmem:[#allocation2] sm:$0xff]
        %v429 = vadd.f32 %v428, %v426
        %v430 = vtanh.pop %v429
        %431 = vst [vmem:[#allocation3] sm:$0xff] %v430
        %s432 = scalar_lea.vmem %s261, 16 [#allocation10]
        %433 = vst [vmem:[%s432] sm:$0xff] %v430
        %v434 = vld [vmem:[#allocation3] sm:$0xff]
        %v435 = vld [vmem:[#allocation9] sm:$0xff]
        %v436 = vld [vmem:[#allocation9 + $0x8] sm:$0xff]
        %v437 = vld [vmem:[#allocation9 + $0x10] sm:$0xff]
        %v438 = vld [vmem:[#allocation9 + $0x18] sm:$0xff]
        %v439 = vld [vmem:[#allocation9 + $0x20] sm:$0xff]
        %v440 = vld [vmem:[#allocation9 + $0x28] sm:$0xff]
        %v441 = vld [vmem:[#allocation9 + $0x30] sm:$0xff]
        %v442 = vld [vmem:[#allocation9 + $0x38] sm:$0xff]
        %v443 = vld [vmem:[#allocation9 + $0x40] sm:$0xff]
        %v444 = vld [vmem:[#allocation9 + $0x48] sm:$0xff]
        %v445 = vld [vmem:[#allocation9 + $0x50] sm:$0xff]
        %v446 = vld [vmem:[#allocation9 + $0x58] sm:$0xff]
        %v447 = vld [vmem:[#allocation9 + $0x60] sm:$0xff]
        %v448 = vld [vmem:[#allocation9 + $0x68] sm:$0xff]
        %v449 = vld [vmem:[#allocation9 + $0x70] sm:$0xff]
        %v450 = vld [vmem:[#allocation9 + $0x78] sm:$0xff]
        %451 = vmatpush.msra.mxu0 %v450
        %452 = vmatpush.msra.mxu0 %v449
        %453 = vmatpush.msra.mxu0 %v448
        %454 = vmatpush.msra.mxu0 %v447
        %455 = vmatpush.msra.mxu0 %v446
        %456 = vmatpush.msra.mxu0 %v445
        %457 = vmatpush.msra.mxu0 %v444
        %458 = vmatpush.msra.mxu0 %v443
        %459 = vmatpush.msra.mxu0 %v442
        %460 = vmatpush.msra.mxu0 %v441
        %461 = vmatpush.msra.mxu0 %v440
        %462 = vmatpush.msra.mxu0 %v439
        %463 = vmatpush.msra.mxu0 %v438
        %464 = vmatpush.msra.mxu0 %v437
        %465 = vmatpush.msra.mxu0 %v436
        %466 = vmatpush.msra.mxu0 %v435
        %467 = vmatmul.f32.gmra.mxu0 %v434
        %v468 = vpop.f32.mrf.mxu0
        %v469 = vadd.f32 0.0, %v468
        %470 = vdwg.mxu0
        %v471 = vld [vmem:[#allocation2] sm:$0xff]
        %v472 = vadd.f32 %v471, %v469
        %v473 = vtanh.pop %v472
        %474 = vst [vmem:[#allocation3] sm:$0xff] %v473
        %s475 = scalar_lea.vmem %s261, 24 [#allocation10]
        %476 = vst [vmem:[%s475] sm:$0xff] %v473
        %v477 = vld [vmem:[#allocation3] sm:$0xff]
        %v478 = vld [vmem:[#allocation9] sm:$0xff]
        %v479 = vld [vmem:[#allocation9 + $0x8] sm:$0xff]
        %v480 = vld [vmem:[#allocation9 + $0x10] sm:$0xff]
        %v481 = vld [vmem:[#allocation9 + $0x18] sm:$0xff]
        %v482 = vld [vmem:[#allocation9 + $0x20] sm:$0xff]
        %v483 = vld [vmem:[#allocation9 + $0x28] sm:$0xff]
        %v484 = vld [vmem:[#allocation9 + $0x30] sm:$0xff]
        %v485 = vld [vmem:[#allocation9 + $0x38] sm:$0xff]
        %v486 = vld [vmem:[#allocation9 + $0x40] sm:$0xff]
        %v487 = vld [vmem:[#allocation9 + $0x48] sm:$0xff]
        %v488 = vld [vmem:[#allocation9 + $0x50] sm:$0xff]
        %v489 = vld [vmem:[#allocation9 + $0x58] sm:$0xff]
        %v490 = vld [vmem:[#allocation9 + $0x60] sm:$0xff]
        %v491 = vld [vmem:[#allocation9 + $0x68] sm:$0xff]
        %v492 = vld [vmem:[#allocation9 + $0x70] sm:$0xff]
        %v493 = vld [vmem:[#allocation9 + $0x78] sm:$0xff]
        %494 = vmatpush.msra.mxu0 %v493
        %495 = vmatpush.msra.mxu0 %v492
        %496 = vmatpush.msra.mxu0 %v491
        %497 = vmatpush.msra.mxu0 %v490
        %498 = vmatpush.msra.mxu0 %v489
        %499 = vmatpush.msra.mxu0 %v488
        %500 = vmatpush.msra.mxu0 %v487
        %501 = vmatpush.msra.mxu0 %v486
        %502 = vmatpush.msra.mxu0 %v485
        %503 = vmatpush.msra.mxu0 %v484
        %504 = vmatpush.msra.mxu0 %v483
        %505 = vmatpush.msra.mxu0 %v482
        %506 = vmatpush.msra.mxu0 %v481
        %507 = vmatpush.msra.mxu0 %v480
        %508 = vmatpush.msra.mxu0 %v479
        %509 = vmatpush.msra.mxu0 %v478
        %510 = vmatmul.f32.gmra.mxu0 %v477
        %v511 = vpop.f32.mrf.mxu0
        %v512 = vadd.f32 0.0, %v511
        %513 = vdwg.mxu0
        %v514 = vld [vmem:[#allocation2] sm:$0xff]
        %v515 = vadd.f32 %v514, %v512
        %v516 = vtanh.pop %v515
        %517 = vst [vmem:[#allocation3] sm:$0xff] %v516
        %s518 = scalar_lea.vmem %s261, 32 [#allocation10]
        %519 = vst [vmem:[%s518] sm:$0xff] %v516
        %v520 = vld [vmem:[#allocation3] sm:$0xff]
        %v521 = vld [vmem:[#allocation9] sm:$0xff]
        %v522 = vld [vmem:[#allocation9 + $0x8] sm:$0xff]
        %v523 = vld [vmem:[#allocation9 + $0x10] sm:$0xff]
        %v524 = vld [vmem:[#allocation9 + $0x18] sm:$0xff]
        %v525 = vld [vmem:[#allocation9 + $0x20] sm:$0xff]
        %v526 = vld [vmem:[#allocation9 + $0x28] sm:$0xff]
        %v527 = vld [vmem:[#allocation9 + $0x30] sm:$0xff]
        %v528 = vld [vmem:[#allocation9 + $0x38] sm:$0xff]
        %v529 = vld [vmem:[#allocation9 + $0x40] sm:$0xff]
        %v530 = vld [vmem:[#allocation9 + $0x48] sm:$0xff]
        %v531 = vld [vmem:[#allocation9 + $0x50] sm:$0xff]
        %v532 = vld [vmem:[#allocation9 + $0x58] sm:$0xff]
        %v533 = vld [vmem:[#allocation9 + $0x60] sm:$0xff]
        %v534 = vld [vmem:[#allocation9 + $0x68] sm:$0xff]
        %v535 = vld [vmem:[#allocation9 + $0x70] sm:$0xff]
        %v536 = vld [vmem:[#allocation9 + $0x78] sm:$0xff]
        %537 = vmatpush.msra.mxu0 %v536
        %538 = vmatpush.msra.mxu0 %v535
        %539 = vmatpush.msra.mxu0 %v534
        %540 = vmatpush.msra.mxu0 %v533
        %541 = vmatpush.msra.mxu0 %v532
        %542 = vmatpush.msra.mxu0 %v531
        %543 = vmatpush.msra.mxu0 %v530
        %544 = vmatpush.msra.mxu0 %v529
        %545 = vmatpush.msra.mxu0 %v528
        %546 = vmatpush.msra.mxu0 %v527
        %547 = vmatpush.msra.mxu0 %v526
        %548 = vmatpush.msra.mxu0 %v525
        %549 = vmatpush.msra.mxu0 %v524
        %550 = vmatpush.msra.mxu0 %v523
        %551 = vmatpush.msra.mxu0 %v522
        %552 = vmatpush.msra.mxu0 %v521
        %553 = vmatmul.f32.gmra.mxu0 %v520
        %v554 = vpop.f32.mrf.mxu0
        %v555 = vadd.f32 0.0, %v554
        %556 = vdwg.mxu0
        %v557 = vld [vmem:[#allocation2] sm:$0xff]
        %v558 = vadd.f32 %v557, %v555
        %v559 = vtanh.pop %v558
        %560 = vst [vmem:[#allocation3] sm:$0xff] %v559
        %s561 = scalar_lea.vmem %s261, 40 [#allocation10]
        %562 = vst [vmem:[%s561] sm:$0xff] %v559
        %v563 = vld [vmem:[#allocation3] sm:$0xff]
        %v564 = vld [vmem:[#allocation9] sm:$0xff]
        %v565 = vld [vmem:[#allocation9 + $0x8] sm:$0xff]
        %v566 = vld [vmem:[#allocation9 + $0x10] sm:$0xff]
        %v567 = vld [vmem:[#allocation9 + $0x18] sm:$0xff]
        %v568 = vld [vmem:[#allocation9 + $0x20] sm:$0xff]
        %v569 = vld [vmem:[#allocation9 + $0x28] sm:$0xff]
        %v570 = vld [vmem:[#allocation9 + $0x30] sm:$0xff]
        %v571 = vld [vmem:[#allocation9 + $0x38] sm:$0xff]
        %v572 = vld [vmem:[#allocation9 + $0x40] sm:$0xff]
        %v573 = vld [vmem:[#allocation9 + $0x48] sm:$0xff]
        %v574 = vld [vmem:[#allocation9 + $0x50] sm:$0xff]
        %v575 = vld [vmem:[#allocation9 + $0x58] sm:$0xff]
        %v576 = vld [vmem:[#allocation9 + $0x60] sm:$0xff]
        %v577 = vld [vmem:[#allocation9 + $0x68] sm:$0xff]
        %v578 = vld [vmem:[#allocation9 + $0x70] sm:$0xff]
        %v579 = vld [vmem:[#allocation9 + $0x78] sm:$0xff]
        %580 = vmatpush.msra.mxu0 %v579
        %581 = vmatpush.msra.mxu0 %v578
        %582 = vmatpush.msra.mxu0 %v577
        %583 = vmatpush.msra.mxu0 %v576
        %584 = vmatpush.msra.mxu0 %v575
        %585 = vmatpush.msra.mxu0 %v574
        %586 = vmatpush.msra.mxu0 %v573
        %587 = vmatpush.msra.mxu0 %v572
        %588 = vmatpush.msra.mxu0 %v571
        %589 = vmatpush.msra.mxu0 %v570
        %590 = vmatpush.msra.mxu0 %v569
        %591 = vmatpush.msra.mxu0 %v568
        %592 = vmatpush.msra.mxu0 %v567
        %593 = vmatpush.msra.mxu0 %v566
        %594 = vmatpush.msra.mxu0 %v565
        %595 = vmatpush.msra.mxu0 %v564
        %596 = vmatmul.f32.gmra.mxu0 %v563
        %v597 = vpop.f32.mrf.mxu0
        %v598 = vadd.f32 0.0, %v597
        %599 = vdwg.mxu0
        %v600 = vld [vmem:[#allocation2] sm:$0xff]
        %v601 = vadd.f32 %v600, %v598
        %v602 = vtanh.pop %v601
        %603 = vst [vmem:[#allocation3] sm:$0xff] %v602
        %s604 = scalar_lea.vmem %s261, 48 [#allocation10]
        %605 = vst [vmem:[%s604] sm:$0xff] %v602
        %v606 = vld [vmem:[#allocation3] sm:$0xff]
        %v607 = vld [vmem:[#allocation9] sm:$0xff]
        %v608 = vld [vmem:[#allocation9 + $0x8] sm:$0xff]
        %v609 = vld [vmem:[#allocation9 + $0x10] sm:$0xff]
        %v610 = vld [vmem:[#allocation9 + $0x18] sm:$0xff]
        %v611 = vld [vmem:[#allocation9 + $0x20] sm:$0xff]
        %v612 = vld [vmem:[#allocation9 + $0x28] sm:$0xff]
        %v613 = vld [vmem:[#allocation9 + $0x30] sm:$0xff]
        %v614 = vld [vmem:[#allocation9 + $0x38] sm:$0xff]
        %v615 = vld [vmem:[#allocation9 + $0x40] sm:$0xff]
        %v616 = vld [vmem:[#allocation9 + $0x48] sm:$0xff]
        %v617 = vld [vmem:[#allocation9 + $0x50] sm:$0xff]
        %v618 = vld [vmem:[#allocation9 + $0x58] sm:$0xff]
        %v619 = vld [vmem:[#allocation9 + $0x60] sm:$0xff]
        %v620 = vld [vmem:[#allocation9 + $0x68] sm:$0xff]
        %v621 = vld [vmem:[#allocation9 + $0x70] sm:$0xff]
        %v622 = vld [vmem:[#allocation9 + $0x78] sm:$0xff]
        %623 = vmatpush.msra.mxu0 %v622
        %624 = vmatpush.msra.mxu0 %v621
        %625 = vmatpush.msra.mxu0 %v620
        %626 = vmatpush.msra.mxu0 %v619
        %627 = vmatpush.msra.mxu0 %v618
        %628 = vmatpush.msra.mxu0 %v617
        %629 = vmatpush.msra.mxu0 %v616
        %630 = vmatpush.msra.mxu0 %v615
        %631 = vmatpush.msra.mxu0 %v614
        %632 = vmatpush.msra.mxu0 %v613
        %633 = vmatpush.msra.mxu0 %v612
        %634 = vmatpush.msra.mxu0 %v611
        %635 = vmatpush.msra.mxu0 %v610
        %636 = vmatpush.msra.mxu0 %v609
        %637 = vmatpush.msra.mxu0 %v608
        %638 = vmatpush.msra.mxu0 %v607
        %639 = vmatmul.f32.gmra.mxu0 %v606
        %v640 = vpop.f32.mrf.mxu0
        %v641 = vadd.f32 0.0, %v640
        %642 = vdwg.mxu0
        %v643 = vld [vmem:[#allocation2] sm:$0xff]
        %v644 = vadd.f32 %v643, %v641
        %v645 = vtanh.pop %v644
        %646 = vst [vmem:[#allocation3] sm:$0xff] %v645
        %s647 = scalar_lea.vmem %s261, 56 [#allocation10]
        %648 = vst [vmem:[%s647] sm:$0xff] %v645
        %s649 = sand.u32 %s133, 1
        %s650 = scalar_lea.sflag [#allocation6], %s649
        %s651 = sand.u32 %s133, 1
        %s652 = smul.addr %s651, 64
        %s653 = scalar_lea.vmem [#allocation10], %s652
        // Predicated region
        $region57: #{tpu_custom_call.1} parent=35 // pred_check
          %p654 = pneg %p143
        $region58: #{tpu_custom_call.1} parent=35 // pred_check_branch
          %656 = sbr.rel (%p654) target = $region60
        $region59: #{tpu_custom_call.1} parent=35 // pred_region
          %s657 = smul.u32 8, %s27
          %659 = vsyncadd %s650, 0
          %s660 = smul.addr %s657, 2
          %s661 = sadd.s32 %s26, %s660
          %s662 = smul.addr %s661, 8
          %s663 = scalar_lea.hbm %s4, %s662
          %s664 = sshll.u32 %s653, 4
          %s665 = int_to_ptr.vmem [resolvable:$true] %s664
          %s666 = sshll.u32 %s663, 4
          %s667 = int_to_ptr.hbm [resolvable:$true] %s666
          %672 = dma.vmem_to_hbm [thread:$0]  %s665, 1024, %s667, %s650, 128, 256, 8
        $region60: #{tpu_custom_call.1} parent=35 // pred_fallthru
          _
      $region36: #{tpu_custom_call.1} parent=5 // pred_fallthru
        _
      %p673 = scmp.le.s32.totalorder 2, %s17
      // Predicated region
      $region61: #{tpu_custom_call.1} parent=5 // pred_check
        %p674 = pneg %p673
      $region62: #{tpu_custom_call.1} parent=5 // pred_check_branch
        %676 = sbr.rel (%p674) target = $region64
      $region63: #{tpu_custom_call.1} parent=5 // pred_region
        %s677 = ssub.s32 %s17, 2
        // Predicated region
        $region65: #{tpu_custom_call.1} parent=63 // pred_check
          %p678 = pneg %p149
        $region66: #{tpu_custom_call.1} parent=63 // pred_check_branch
          %680 = sbr.rel (%p678) target = $region68
        $region67: #{tpu_custom_call.1} parent=63 // pred_region
          %s681 = sand.u32 %s134, 1
          %s682 = scalar_lea.sflag [#allocation6], %s681
          %s683 = sand.u32 %s134, 1
          %s684 = smul.addr %s683, 64
          %s685 = scalar_lea.vmem [#allocation10], %s684
          %687 = dma.done %s682, 1024
        $region68: #{tpu_custom_call.1} parent=63 // pred_fallthru
          _
      $region64: #{tpu_custom_call.1} parent=5 // pred_fallthru
        _
    $region6: #{tpu_custom_call.1} parent=1 // loop_footer
      %s21 = sadd.s32 1, %s17
    $region7: #{tpu_custom_call.1} parent=1 // loop_footer_branch
      %16 = sbr.rel target = $region3
    $region8: #{tpu_custom_call.1} parent=1 // loop_exit
      _
    %688 = vsyncpa [#allocation5], 1
    %s689 = scalar_lea.sflag [#allocation5], 1
    %690 = vsyncpa %s689, 1
    %691 = vsyncpa [#allocation8], 1
    %692 = vsyncpa [#allocation6], 1
    %s693 = scalar_lea.sflag [#allocation6], 1
    %694 = vsyncpa %s693, 1

</llo_original>
